<compile_context>
chip_gen: v6e
topology: v6e:2x2x1
jax: 0.10.0
libtpu: 0.0.40
codegen_flags: <defaults>
</compile_context>

<pallas_src>
import functools

import jax
import jax.numpy as jnp
from jax.experimental import pallas as pl
from jax.experimental.pallas import tpu as pltpu


def _fused_kernel(x_ref, wid_ref, wsin_ref, b_ref, o_ref):
    # x_ref    : (tile_n, CF)       input rows, original layout
    # wid_ref  : (CF, KO_pad)       identity-basis weights (scattered, pre-transposed)
    # wsin_ref : (CF, KO_pad)       sin-basis weights      (scattered, pre-transposed)
    # b_ref    : (1, KO_pad)        bias (f32)
    # o_ref    : (tile_n, KO_pad)
    x = x_ref[...]
    acc = jnp.dot(x, wid_ref[...], preferred_element_type=jnp.float32)
    acc += jnp.dot(jnp.sin(x), wsin_ref[...], preferred_element_type=jnp.float32)
    o_ref[...] = (acc + b_ref[...]).astype(o_ref.dtype)


def _round_up(v, m):
    return ((v + m - 1) // m) * m


@functools.partial(jax.jit, static_argnames=("C",))
def net_forward(x, neuron, W, b, C):
    """
    x      : (N, channels * C)   float32/bf16  (samples*time, channels*in_dims)
    neuron : (K,)                int32         neurons to evaluate
    W      : (channels, O, 2*C)  float32       per-neuron weights, cols = [identity | sin]
    b      : (channels, O)       float32       per-neuron bias
    returns (N, K * O)           x.dtype
    """
    N, CF = x.shape
    channels = CF // C
    K = neuron.shape[0]
    O = W.shape[1]
    KO = K * O
    isz = x.dtype.itemsize

    # ---- optional lane-dense output padding (only when cheap and N is large) ---------
    KO_pad = KO
    if (KO % 128 != 0) and (N >= 4096):
        cand = _round_up(KO, 128)
        if cand - KO <= KO // 2:          # <= 50% extra writeback bytes
            KO_pad = cand

    # ---- N tile: amortize ~0.35us/step, stay within a conservative VMEM budget -------
    hbm_row = isz * (CF + KO_pad)                               # x read + out write / row
    vmem_row = isz * 2 * (CF + KO_pad) + 4 * (CF + 2 * KO_pad)  # dbl-buffers + f32 temps
    tile = min((8 << 20) // hbm_row,      # >= ~8 MiB HBM traffic per grid step
               (40 << 20) // vmem_row,    # ~40 MiB VMEM budget (v7x-safe)
               32768)
    tile = max(8, (tile // 8) * 8)
    if N <= tile:
        # >=2 steps for medium N so the parallel axis can use both v7x TensorCores.
        tile = _round_up(-(-N // 2), 8) if N >= 1024 else N

    # ---- tiny weight prep (channels*C x K*O floats; negligible vs x) -----------------
    W_sel = W[neuron]                                          # (K, O, 2C)
    W_id = jnp.transpose(W_sel[:, :, :C], (0, 2, 1))           # (K, C, O)
    W_sin = jnp.transpose(W_sel[:, :, C:], (0, 2, 1))          # (K, C, O)
    sel = (jnp.arange(channels, dtype=neuron.dtype)[:, None]
           == neuron[None, :]).astype(W.dtype)                 # (channels, K)
    Wid_big = (sel[:, None, :, None]
               * jnp.transpose(W_id, (1, 0, 2))[None]).reshape(CF, KO)
    Wsin_big = (sel[:, None, :, None]
                * jnp.transpose(W_sin, (1, 0, 2))[None]).reshape(CF, KO)
    b_big = b[neuron].reshape(1, KO).astype(jnp.float32)
    if KO_pad != KO:
        pad = KO_pad - KO
        Wid_big = jnp.pad(Wid_big, ((0, 0), (0, pad)))
        Wsin_big = jnp.pad(Wsin_big, ((0, 0), (0, pad)))
        b_big = jnp.pad(b_big, ((0, 0), (0, pad)))
    Wid_big = Wid_big.astype(x.dtype)
    Wsin_big = Wsin_big.astype(x.dtype)

    grid = (pl.cdiv(N, tile),)

    vmem_need = tile * vmem_row + 4 * CF * KO_pad * isz + 2 * KO_pad * 4
    vmem_limit = min(vmem_need + (8 << 20), 56 << 20)

    cost = pl.CostEstimate(
        flops=4 * N * CF * KO_pad,                # two matmuls
        transcendentals=N * CF,                   # sin(x)
        bytes_accessed=isz * (N * CF + 2 * CF * KO_pad + N * KO_pad) + 4 * KO_pad,
    )

    out = pl.pallas_call(
        _fused_kernel,
        out_shape=jax.ShapeDtypeStruct((N, KO_pad), x.dtype),
        grid=grid,
        in_specs=[
            pl.BlockSpec((tile, CF), lambda i: (i, 0)),
            pl.BlockSpec((CF, KO_pad), lambda i: (0, 0)),
            pl.BlockSpec((CF, KO_pad), lambda i: (0, 0)),
            pl.BlockSpec((1, KO_pad), lambda i: (0, 0)),
        ],
        out_specs=pl.BlockSpec((tile, KO_pad), lambda i: (i, 0)),
        compiler_params=pltpu.CompilerParams(
            dimension_semantics=("parallel",),
            vmem_limit_bytes=int(vmem_limit),
        ),
        cost_estimate=cost,
    )(x, Wid_big, Wsin_big, b_big)

    if KO_pad != KO:
        out = out[:, :KO]
    return out


def _reference(x, neuron, W, b, C):
    # pure-JAX reference of the PyTorch forward
    N = x.shape[0]
    xi = x.reshape(N, -1, C)
    xe = jnp.concatenate([xi, jnp.sin(xi)], axis=-1)            # (N, channels, 2C)
    xe = xe[:, neuron, :]                                       # (N, K, 2C)
    o = jnp.einsum('nke,koe->nko', xe, W[neuron]) + b[neuron][None]
    return o.reshape(N, -1)


if __name__ == "__main__":
    key = jax.random.PRNGKey(0)

    def run_case(N, C, channels, max_count, neuron):
        O = max_count + 1
        kx, kw, kb = jax.random.split(jax.random.fold_in(key, N), 3)
        x = jax.random.normal(kx, (N, channels * C), dtype=jnp.float32)
        W = 0.1 * jax.random.normal(kw, (channels, O, 2 * C), dtype=jnp.float32)
        b = 0.1 * jax.random.normal(kb, (channels, O), dtype=jnp.float32)
        out = jax.block_until_ready(net_forward(x, neuron, W, b, C))
        ref = _reference(x, neuron, W, b, C)
        assert out.shape == (N, neuron.shape[0] * O), out.shape
        err = float(jnp.max(jnp.abs(out - ref)))
        assert jnp.allclose(out, ref, atol=1e-4, rtol=1e-4), err

    # small, module-consistent shapes (K != channels exercises the neuron gather/scatter)
    run_case(N=16, C=4, channels=4, max_count=7,
             neuron=jnp.array([2, 0, 3], dtype=jnp.int32))
    # larger: un-padded ragged last block, >=2 grid steps, lane-padded KO (96 -> 128)
    run_case(N=5000, C=4, channels=12, max_count=7,
             neuron=jnp.arange(12, dtype=jnp.int32))

    print("KERNEL_OK")
</pallas_src>

<mosaic_0001>
module attributes {stable_mosaic.version = 11 : i64} {
  func.func @_fused_kernel(%arg0: i32, %arg1: memref<16x16xf32, #tpu.memory_space<vmem>>, %arg2: memref<16x24xf32, #tpu.memory_space<vmem>>, %arg3: memref<16x24xf32, #tpu.memory_space<vmem>>, %arg4: memref<1x24xf32, #tpu.memory_space<vmem>>, %arg5: memref<16x24xf32, #tpu.memory_space<vmem>>) attributes {dimension_semantics = [#tpu.dimension_semantics<parallel>], iteration_bounds = array<i64: 1>, scalar_prefetch = 0 : i64, scratch_operands = 0 : i64, tpu.core_type = #tpu.core_type<tc>, window_params = [{transform_indices = @transform_0, window_bounds = array<i64: 16, 16>}, {pipeline_mode = #tpu.pipeline_mode<synchronous>, transform_indices = @transform_1, window_bounds = array<i64: 16, 24>}, {pipeline_mode = #tpu.pipeline_mode<synchronous>, transform_indices = @transform_2, window_bounds = array<i64: 16, 24>}, {pipeline_mode = #tpu.pipeline_mode<synchronous>, transform_indices = @transform_3, window_bounds = array<i64: 1, 24>}, {transform_indices = @transform_4, window_bounds = array<i64: 16, 24>}]} {
    %c0 = arith.constant 0 : index
    %c0_0 = arith.constant 0 : index
    %0 = vector.load %arg1[%c0, %c0_0] : memref<16x16xf32, #tpu.memory_space<vmem>>, vector<16x16xf32>
    %c0_1 = arith.constant 0 : index
    %c0_2 = arith.constant 0 : index
    %1 = vector.load %arg2[%c0_1, %c0_2] : memref<16x24xf32, #tpu.memory_space<vmem>>, vector<16x24xf32>
    %cst = arith.constant dense<0.000000e+00> : vector<16x24xf32>
    %2 = tpu.matmul %0, %1, %cst {dimension_numbers = #tpu.dot_dimension_numbers<[1], [0], [0], [1], [0, 0, 1, 1], [], []>} : vector<16x16xf32>, vector<16x24xf32>, vector<16x24xf32> -> vector<16x24xf32>
    %3 = math.sin %0 : vector<16x16xf32>
    %c0_3 = arith.constant 0 : index
    %c0_4 = arith.constant 0 : index
    %4 = vector.load %arg3[%c0_3, %c0_4] : memref<16x24xf32, #tpu.memory_space<vmem>>, vector<16x24xf32>
    %cst_5 = arith.constant dense<0.000000e+00> : vector<16x24xf32>
    %5 = tpu.matmul %3, %4, %cst_5 {dimension_numbers = #tpu.dot_dimension_numbers<[1], [0], [0], [1], [0, 0, 1, 1], [], []>} : vector<16x16xf32>, vector<16x24xf32>, vector<16x24xf32> -> vector<16x24xf32>
    %6 = arith.addf %2, %5 : vector<16x24xf32>
    %c0_6 = arith.constant 0 : index
    %c0_7 = arith.constant 0 : index
    %7 = vector.load %arg4[%c0_6, %c0_7] : memref<1x24xf32, #tpu.memory_space<vmem>>, vector<1x24xf32>
    %8 = vector.broadcast %7 : vector<1x24xf32> to vector<16x24xf32>
    %9 = arith.addf %6, %8 : vector<16x24xf32>
    %c0_8 = arith.constant 0 : index
    %c0_9 = arith.constant 0 : index
    %10 = vector.load %arg5[%c0_8, %c0_9] : memref<16x24xf32, #tpu.memory_space<vmem>>, vector<16x24xf32>
    tpu.vector_store %arg5[%c0_8, %c0_9], %9 {strides = array<i32>} : memref<16x24xf32, #tpu.memory_space<vmem>>, vector<16x24xf32>,
    return
  }
  func.func @transform_0(%arg0: i32) -> (i32, i32) {
    %c0_i32 = arith.constant 0 : i32
    %c0_i32_0 = arith.constant 0 : i32
    return %arg0, %c0_i32 : i32, i32
  }
  func.func @transform_1(%arg0: i32) -> (i32, i32) {
    %c0_i32 = arith.constant 0 : i32
    %c0_i32_0 = arith.constant 0 : i32
    %c0_i32_1 = arith.constant 0 : i32
    return %c0_i32, %c0_i32_0 : i32, i32
  }
  func.func @transform_2(%arg0: i32) -> (i32, i32) {
    %c0_i32 = arith.constant 0 : i32
    %c0_i32_0 = arith.constant 0 : i32
    %c0_i32_1 = arith.constant 0 : i32
    return %c0_i32, %c0_i32_0 : i32, i32
  }
  func.func @transform_3(%arg0: i32) -> (i32, i32) {
    %c0_i32 = arith.constant 0 : i32
    %c0_i32_0 = arith.constant 0 : i32
    %c0_i32_1 = arith.constant 0 : i32
    return %c0_i32, %c0_i32_0 : i32, i32
  }
  func.func @transform_4(%arg0: i32) -> (i32, i32) {
    %c0_i32 = arith.constant 0 : i32
    %c0_i32_0 = arith.constant 0 : i32
    return %arg0, %c0_i32 : i32, i32
  }
}

</mosaic_0001>

<llo_original>
// kernel: net_forward.1
$region0: #{net_forward.1}
  #allocation0 [shape = 'u32[]', space=smem, size = 0x4, offset = 0x4, fixed_abs, tag = 'smem constant byte address 0x4 - core index']
  #allocation1 [shape = 'u32[144,128]{1,0:T(1,128)}', space=vmem, size = 0x12000, scoped, tag = 'internal scratch']
  %s0 = inlined_call_operand.vmem [shape: f32[16,16], index: 0, kind: input, shape index: {}]
  %s1 = inlined_call_operand.vmem [shape: f32[16,24], index: 1, kind: input, shape index: {}]
  %s2 = inlined_call_operand.vmem [shape: f32[16,24], index: 2, kind: input, shape index: {}]
  %s3 = inlined_call_operand.vmem [shape: f32[1,24], index: 3, kind: input, shape index: {}]
  %s4 = inlined_call_operand.hbm [shape: f32[16,24], index: 4, kind: output, shape index: {}]
  %s5 = sld [smem:[#allocation0]]
  $region26: #{net_forward.1} parent=0
    _
  %s7 = ssub.s32 1, %s5
  %s8 = scalar_select 0, %s7, %s5
  $region1: #{net_forward.1} parent=0
    #allocation2 [shape = 'u8[8192]{0}', space=vmem, size = 0x2000, scoped, tag = 'output window, operand 0, single buffered']
    #allocation3 [shape = 's32[1]{0}', space=sflag, size = 0x4, scoped, tag = 'scoped memory for net_forward.1']
    %9 = vsyncpa [#allocation3], 0
    // Predicated region
    $region2: #{net_forward.1} parent=1 // pred_check
      _
    $region3: #{net_forward.1} parent=1 // pred_check_branch
      %11 = sbr.rel (0) target = $region5
    $region4: #{net_forward.1} parent=1 // pred_region
      _
    $region5: #{net_forward.1} parent=1 // pred_fallthru
      _
    // Predicated region
    $region6: #{net_forward.1} parent=1 // pred_check
      _
    $region7: #{net_forward.1} parent=1 // pred_check_branch
      %13 = sbr.rel (0) target = $region9
    $region8: #{net_forward.1} parent=1 // pred_region
      _
    $region9: #{net_forward.1} parent=1 // pred_fallthru
      _
    // Predicated region
    $region10: #{net_forward.1} parent=1 // pred_check
      _
    $region11: #{net_forward.1} parent=1 // pred_check_branch
      %15 = sbr.rel (0) target = $region13
    $region12: #{net_forward.1} parent=1 // pred_region
      _
    $region13: #{net_forward.1} parent=1 // pred_fallthru
      _
    // Predicated region
    $region14: #{net_forward.1} parent=1 // pred_check
      _
    $region15: #{net_forward.1} parent=1 // pred_check_branch
      %17 = sbr.rel (0) target = $region17
    $region16: #{net_forward.1} parent=1 // pred_region
      _
    $region17: #{net_forward.1} parent=1 // pred_fallthru
      _
    %v18 = vld [vmem:[%s0] sm:$0xff]
    %v19 = vld [vmem:[%s0 + $0x8] sm:$0xff]
    %v20 = vld [vmem:[%s1] sm:$0xff]
    %v21 = vld [vmem:[%s1 + $0x8] sm:$0xff]
    %v22 = vand.u32 2147483647, %v18
    %vm23 = vcmp.le.f32.partialorder %v22, 0.7853982
    %vm24 = vcmp.lt.s32.totalorder %v18, 0
    %v25 = vand.u32 %v18, 2139095040
    %v26 = vshrl.u32 %v25, 23
    %v27 = vsub.s32 %v26, 127
    %v28 = vand.u32 2147483647, %v18
    %v29 = vand.u32 %v28, 8388607
    %v30 = vor.u32 %v29, 8388608
    %v31 = vsub.s32 0, %v30
    %v32 = vadd.s32 %v27, 1
    %vm33 = vcmp.gt.s32.totalorder %v32, 0
    %v34 = vsel %vm33, %v32, 0
    %v35 = vshrl.u32 %v34, 5
    %v36 = vand.u32 %v34, 31
    %v37 = vsub.s32 32, %v36
    %v38 = vshrl.u32 683565275, %v37
    %v39 = vshll.u32 683565275, %v36
    %v40 = vshrl.u32 2475754826, %v37
    %v41 = vor.u32 %v39, %v40
    %v42 = vshll.u32 2475754826, %v36
    %v43 = vshrl.u32 2131351028, %v37
    %v44 = vor.u32 %v42, %v43
    %v45 = vshll.u32 2131351028, %v36
    %v46 = vshrl.u32 2102212464, %v37
    %v47 = vor.u32 %v45, %v46
    %v48 = vshll.u32 2102212464, %v36
    %v49 = vshrl.u32 920167782, %v37
    %v50 = vor.u32 %v48, %v49
    %v51 = vshll.u32 920167782, %v36
    %v52 = vshrl.u32 1326507024, %v37
    %v53 = vor.u32 %v51, %v52
    %vm54 = vcmp.lt.s32.totalorder %v35, 1
    %vm55 = vcmp.lt.s32.totalorder %v35, 2
    %vm56 = vcmp.lt.s32.totalorder %v35, 3
    %vm57 = vcmp.lt.s32.totalorder %v35, 4
    %v58 = vsel %vm54, %v38, %v41
    %v59 = vsel %vm57, %v47, 2102212464
    %v60 = vsel %vm56, %v44, %v59
    %v61 = vsel %vm55, %v58, %v60
    %v62 = vsel %vm54, %v41, %v44
    %v63 = vsel %vm57, %v50, 920167782
    %v64 = vsel %vm56, %v47, %v63
    %v65 = vsel %vm55, %v62, %v64
    %v66 = vsel %vm54, %v44, %v47
    %v67 = vsel %vm57, %v53, 1326507024
    %v68 = vsel %vm56, %v50, %v67
    %v69 = vsel %vm55, %v66, %v68
    %v70 = vshll.u32 %v30, 8
    %v71 = vmul.u32.u64.compose %v70, %v69
    %v72 = vextract.low.u32 %v71
    %v73 = vextract.high.u32 %v71
    %v74 = vmul.u32.u64.compose %v70, %v65
    %v75 = vextract.low.u32 %v74
    %v76 = vextract.high.u32 %v74
    %v77 = vmul.u32 %v70, %v61
    %v78 = vadd.s32 %v73, %v75
    %vm79 = vc.u32 %v73, %v75
    %v80 = vadd.s32 %v76, 1
    %v81 = vsel %vm79, %v80, %v76
    %v82 = vadd.s32 %v77, %v81
    %v83 = vadd.s32 %v82, 536870912
    %v84 = vshrl.u32 %v83, 30
    %v85 = vshll.u32 %v84, 30
    %v86 = vsub.s32 %v82, %v85
    %vm87 = vcmp.lt.s32.totalorder %v86, 0
    %v88 = vsub.s32 0, %v86
    %v89 = vsel %vm87, %v88, %v86
    %v90 = vclz %v89
    %v91 = vsub.s32 %v90, 2
    %vm92 = vcmp.gt.s32.totalorder 0, %v91
    %v93 = vsel %vm92, 0, %v91
    %v94 = vsub.s32 32, %v93
    %v95 = vshll.u32 %v86, %v93
    %v96 = vshrl.u32 %v78, %v94
    %v97 = vor.u32 %v95, %v96
    %v98 = vsub.s32 4294967266, %v93
    %v99 = vadd.s32 %v98, 127
    %v100 = vshll.u32 %v99, 23
    %v101 = vor.u32 4788187, %v100
    %v102 = vand.u32 2147483647, %v101
    %v104 = vcvt.s32.f32 %v97
    %v105 = vmul.f32 %v104, %v102
    %v106 = vxor.u32 %v105, 2147483648
    %v107 = vsel %vm24, %v106, %v105
    %v108 = vsub.s32 4, %v84
    %v109 = vsel %vm24, %v108, %v84
    %v110 = vsel %vm23, %v18, %v107
    %v111 = vsel %vm23, 0, %v109
    %v112 = vcosq.f32.pop %v110
    %v113 = vsinq.f32.pop %v110
    %vm114 = vweird.f32 %v18
    %v115 = vadd.s32 %v111, 3
    %v116 = vand.u32 %v115, 3
    %vm117 = vcmp.lt.s32.totalorder %v116, 2
    %vm118 = vcmp.eq.s32.totalorder %v116, 0
    %v119 = vxor.u32 %v113, 2147483648
    %v120 = vsel %vm118, %v112, %v119
    %vm121 = vcmp.eq.s32.totalorder %v116, 2
    %v122 = vxor.u32 %v112, 2147483648
    %v123 = vsel %vm121, %v122, %v113
    %v124 = vsel %vm117, %v120, %v123
    %v125 = vsel %vm114, nan, %v124
    %v126 = vand.u32 2147483647, %v19
    %vm127 = vcmp.le.f32.partialorder %v126, 0.7853982
    %vm128 = vcmp.lt.s32.totalorder %v19, 0
    %v129 = vand.u32 %v19, 2139095040
    %v130 = vshrl.u32 %v129, 23
    %v131 = vsub.s32 %v130, 127
    %v132 = vand.u32 2147483647, %v19
    %v133 = vand.u32 %v132, 8388607
    %v134 = vor.u32 %v133, 8388608
    %v135 = vsub.s32 0, %v134
    %v136 = vadd.s32 %v131, 1
    %vm137 = vcmp.gt.s32.totalorder %v136, 0
    %v138 = vsel %vm137, %v136, 0
    %v139 = vshrl.u32 %v138, 5
    %v140 = vand.u32 %v138, 31
    %v141 = vsub.s32 32, %v140
    %v142 = vshrl.u32 683565275, %v141
    %v143 = vshll.u32 683565275, %v140
    %v144 = vshrl.u32 2475754826, %v141
    %v145 = vor.u32 %v143, %v144
    %v146 = vshll.u32 2475754826, %v140
    %v147 = vshrl.u32 2131351028, %v141
    %v148 = vor.u32 %v146, %v147
    %v149 = vshll.u32 2131351028, %v140
    %v150 = vshrl.u32 2102212464, %v141
    %v151 = vor.u32 %v149, %v150
    %v152 = vshll.u32 2102212464, %v140
    %v153 = vshrl.u32 920167782, %v141
    %v154 = vor.u32 %v152, %v153
    %v155 = vshll.u32 920167782, %v140
    %v156 = vshrl.u32 1326507024, %v141
    %v157 = vor.u32 %v155, %v156
    %vm158 = vcmp.lt.s32.totalorder %v139, 1
    %vm159 = vcmp.lt.s32.totalorder %v139, 2
    %vm160 = vcmp.lt.s32.totalorder %v139, 3
    %vm161 = vcmp.lt.s32.totalorder %v139, 4
    %v162 = vsel %vm158, %v142, %v145
    %v163 = vsel %vm161, %v151, 2102212464
    %v164 = vsel %vm160, %v148, %v163
    %v165 = vsel %vm159, %v162, %v164
    %v166 = vsel %vm158, %v145, %v148
    %v167 = vsel %vm161, %v154, 920167782
    %v168 = vsel %vm160, %v151, %v167
    %v169 = vsel %vm159, %v166, %v168
    %v170 = vsel %vm158, %v148, %v151
    %v171 = vsel %vm161, %v157, 1326507024
    %v172 = vsel %vm160, %v154, %v171
    %v173 = vsel %vm159, %v170, %v172
    %v174 = vshll.u32 %v134, 8
    %v175 = vmul.u32.u64.compose %v174, %v173
    %v176 = vextract.low.u32 %v175
    %v177 = vextract.high.u32 %v175
    %v178 = vmul.u32.u64.compose %v174, %v169
    %v179 = vextract.low.u32 %v178
    %v180 = vextract.high.u32 %v178
    %v181 = vmul.u32 %v174, %v165
    %v182 = vadd.s32 %v177, %v179
    %vm183 = vc.u32 %v177, %v179
    %v184 = vadd.s32 %v180, 1
    %v185 = vsel %vm183, %v184, %v180
    %v186 = vadd.s32 %v181, %v185
    %v187 = vadd.s32 %v186, 536870912
    %v188 = vshrl.u32 %v187, 30
    %v189 = vshll.u32 %v188, 30
    %v190 = vsub.s32 %v186, %v189
    %vm191 = vcmp.lt.s32.totalorder %v190, 0
    %v192 = vsub.s32 0, %v190
    %v193 = vsel %vm191, %v192, %v190
    %v194 = vclz %v193
    %v195 = vsub.s32 %v194, 2
    %vm196 = vcmp.gt.s32.totalorder 0, %v195
    %v197 = vsel %vm196, 0, %v195
    %v198 = vsub.s32 32, %v197
    %v199 = vshll.u32 %v190, %v197
    %v200 = vshrl.u32 %v182, %v198
    %v201 = vor.u32 %v199, %v200
    %v202 = vsub.s32 4294967266, %v197
    %v203 = vadd.s32 %v202, 127
    %v204 = vshll.u32 %v203, 23
    %v205 = vor.u32 4788187, %v204
    %v206 = vand.u32 2147483647, %v205
    %v208 = vcvt.s32.f32 %v201
    %v209 = vmul.f32 %v208, %v206
    %v210 = vxor.u32 %v209, 2147483648
    %v211 = vsel %vm128, %v210, %v209
    %v212 = vsub.s32 4, %v188
    %v213 = vsel %vm128, %v212, %v188
    %v214 = vsel %vm127, %v19, %v211
    %v215 = vsel %vm127, 0, %v213
    %v216 = vcosq.f32.pop %v214
    %v217 = vsinq.f32.pop %v214
    %vm218 = vweird.f32 %v19
    %v219 = vadd.s32 %v215, 3
    %v220 = vand.u32 %v219, 3
    %vm221 = vcmp.lt.s32.totalorder %v220, 2
    %vm222 = vcmp.eq.s32.totalorder %v220, 0
    %v223 = vxor.u32 %v217, 2147483648
    %v224 = vsel %vm222, %v216, %v223
    %vm225 = vcmp.eq.s32.totalorder %v220, 2
    %v226 = vxor.u32 %v216, 2147483648
    %v227 = vsel %vm225, %v226, %v217
    %v228 = vsel %vm221, %v224, %v227
    %v229 = vsel %vm218, nan, %v228
    %v230 = vld [vmem:[%s2] sm:$0xff]
    %v231 = vld [vmem:[%s2 + $0x8] sm:$0xff]
    %vm232 = vcmask 130048
    %v234 = vsel %vm232, %v125, 0
    %v237 = vsel %vm232, %v229, 0
    %239 = vmatprep.subr.mxu0 0.0
    %240 = vmatpush1.msra.mxu0 0.0
    %241 = vmatprep.subr.mxu0 0.0
    %242 = vmatpush1.msra.mxu0 0.0
    %243 = vmatprep.subr.mxu0 0.0
    %244 = vmatpush1.msra.mxu0 0.0
    %245 = vmatprep.subr.mxu0 0.0
    %246 = vmatpush1.msra.mxu0 0.0
    %247 = vmatprep.subr.mxu0 0.0
    %248 = vmatpush1.msra.mxu0 0.0
    %249 = vmatprep.subr.mxu0 0.0
    %250 = vmatpush1.msra.mxu0 0.0
    %251 = vmatprep.subr.mxu0 0.0
    %252 = vmatpush1.msra.mxu0 0.0
    %253 = vmatprep.subr.mxu0 0.0
    %254 = vmatpush1.msra.mxu0 0.0
    %255 = vmatprep.subr.mxu0 0.0
    %256 = vmatpush1.msra.mxu0 0.0
    %257 = vmatprep.subr.mxu0 0.0
    %258 = vmatpush1.msra.mxu0 0.0
    %259 = vmatprep.subr.mxu0 0.0
    %260 = vmatpush1.msra.mxu0 0.0
    %261 = vmatprep.subr.mxu0 0.0
    %262 = vmatpush1.msra.mxu0 0.0
    %263 = vmatprep.subr.mxu0 0.0
    %264 = vmatpush1.msra.mxu0 0.0
    %265 = vmatprep.subr.mxu0 0.0
    %266 = vmatpush1.msra.mxu0 0.0
    %267 = vmatprep.subr.mxu0 0.0
    %268 = vmatpush1.msra.mxu0 %v231
    %269 = vmatprep.subr.mxu0 0.0
    %270 = vmatpush1.msra.mxu0 %v230
    %271 = vmatprep.subr.mxu0 0.0
    %272 = vmatpush2.msra.mxu0 0.0
    %273 = vmatprep.subr.mxu0 0.0
    %274 = vmatpush2.msra.mxu0 0.0
    %275 = vmatprep.subr.mxu0 0.0
    %276 = vmatpush2.msra.mxu0 0.0
    %277 = vmatprep.subr.mxu0 0.0
    %278 = vmatpush2.msra.mxu0 0.0
    %279 = vmatprep.subr.mxu0 0.0
    %280 = vmatpush2.msra.mxu0 0.0
    %281 = vmatprep.subr.mxu0 0.0
    %282 = vmatpush2.msra.mxu0 0.0
    %283 = vmatprep.subr.mxu0 0.0
    %284 = vmatpush2.msra.mxu0 0.0
    %285 = vmatprep.subr.mxu0 0.0
    %286 = vmatpush2.msra.mxu0 0.0
    %287 = vmatprep.subr.mxu0 0.0
    %288 = vmatpush2.msra.mxu0 0.0
    %289 = vmatprep.subr.mxu0 0.0
    %290 = vmatpush2.msra.mxu0 0.0
    %291 = vmatprep.subr.mxu0 0.0
    %292 = vmatpush2.msra.mxu0 0.0
    %293 = vmatprep.subr.mxu0 0.0
    %294 = vmatpush2.msra.mxu0 0.0
    %295 = vmatprep.subr.mxu0 0.0
    %296 = vmatpush2.msra.mxu0 0.0
    %297 = vmatprep.subr.mxu0 0.0
    %298 = vmatpush2.msra.mxu0 0.0
    %299 = vmatprep.subr.mxu0 0.0
    %300 = vmatpush2.msra.mxu0 0.0
    %301 = vmatprep.subr.mxu0 0.0
    %302 = vmatpush2.msra.mxu0 0.0
    %303 = vmatprep.mubr.f32.mxu0 0.0
    %304 = vmatmul.mubr.f32.gmra.mxu0 %v234
    %v305 = vpop.f32.mrf.mxu0
    %v306 = vadd.f32 0.0, %v305
    %v307 = vpop.f32.mrf.mxu0
    %308 = vmatprep.mubr.f32.mxu0 0.0
    %309 = vmatmul.mubr.f32.gmra.mxu0 %v237
    %v310 = vpop.f32.mrf.mxu0
    %v311 = vadd.f32 0.0, %v310
    %v312 = vpop.f32.mrf.mxu0
    %313 = vdwg.mxu0
    %v315 = vsel %vm232, %v18, 0
    %v318 = vsel %vm232, %v19, 0
    %320 = vmatprep.subr.mxu0 0.0
    %321 = vmatpush1.msra.mxu0 0.0
    %322 = vmatprep.subr.mxu0 0.0
    %323 = vmatpush1.msra.mxu0 0.0
    %324 = vmatprep.subr.mxu0 0.0
    %325 = vmatpush1.msra.mxu0 0.0
    %326 = vmatprep.subr.mxu0 0.0
    %327 = vmatpush1.msra.mxu0 0.0
    %328 = vmatprep.subr.mxu0 0.0
    %329 = vmatpush1.msra.mxu0 0.0
    %330 = vmatprep.subr.mxu0 0.0
    %331 = vmatpush1.msra.mxu0 0.0
    %332 = vmatprep.subr.mxu0 0.0
    %333 = vmatpush1.msra.mxu0 0.0
    %334 = vmatprep.subr.mxu0 0.0
    %335 = vmatpush1.msra.mxu0 0.0
    %336 = vmatprep.subr.mxu0 0.0
    %337 = vmatpush1.msra.mxu0 0.0
    %338 = vmatprep.subr.mxu0 0.0
    %339 = vmatpush1.msra.mxu0 0.0
    %340 = vmatprep.subr.mxu0 0.0
    %341 = vmatpush1.msra.mxu0 0.0
    %342 = vmatprep.subr.mxu0 0.0
    %343 = vmatpush1.msra.mxu0 0.0
    %344 = vmatprep.subr.mxu0 0.0
    %345 = vmatpush1.msra.mxu0 0.0
    %346 = vmatprep.subr.mxu0 0.0
    %347 = vmatpush1.msra.mxu0 0.0
    %348 = vmatprep.subr.mxu0 0.0
    %349 = vmatpush1.msra.mxu0 %v21
    %350 = vmatprep.subr.mxu0 0.0
    %351 = vmatpush1.msra.mxu0 %v20
    %352 = vmatprep.subr.mxu0 0.0
    %353 = vmatpush2.msra.mxu0 0.0
    %354 = vmatprep.subr.mxu0 0.0
    %355 = vmatpush2.msra.mxu0 0.0
    %356 = vmatprep.subr.mxu0 0.0
    %357 = vmatpush2.msra.mxu0 0.0
    %358 = vmatprep.subr.mxu0 0.0
    %359 = vmatpush2.msra.mxu0 0.0
    %360 = vmatprep.subr.mxu0 0.0
    %361 = vmatpush2.msra.mxu0 0.0
    %362 = vmatprep.subr.mxu0 0.0
    %363 = vmatpush2.msra.mxu0 0.0
    %364 = vmatprep.subr.mxu0 0.0
    %365 = vmatpush2.msra.mxu0 0.0
    %366 = vmatprep.subr.mxu0 0.0
    %367 = vmatpush2.msra.mxu0 0.0
    %368 = vmatprep.subr.mxu0 0.0
    %369 = vmatpush2.msra.mxu0 0.0
    %370 = vmatprep.subr.mxu0 0.0
    %371 = vmatpush2.msra.mxu0 0.0
    %372 = vmatprep.subr.mxu0 0.0
    %373 = vmatpush2.msra.mxu0 0.0
    %374 = vmatprep.subr.mxu0 0.0
    %375 = vmatpush2.msra.mxu0 0.0
    %376 = vmatprep.subr.mxu0 0.0
    %377 = vmatpush2.msra.mxu0 0.0
    %378 = vmatprep.subr.mxu0 0.0
    %379 = vmatpush2.msra.mxu0 0.0
    %380 = vmatprep.subr.mxu0 0.0
    %381 = vmatpush2.msra.mxu0 0.0
    %382 = vmatprep.subr.mxu0 0.0
    %383 = vmatpush2.msra.mxu0 0.0
    %384 = vmatprep.mubr.f32.mxu0 0.0
    %385 = vmatmul.mubr.f32.gmra.mxu0 %v315
    %v386 = vpop.f32.mrf.mxu0
    %v387 = vadd.f32 %v306, %v386
    %v388 = vpop.f32.mrf.mxu0
    %389 = vmatprep.mubr.f32.mxu0 0.0
    %390 = vmatmul.mubr.f32.gmra.mxu0 %v318
    %v391 = vpop.f32.mrf.mxu0
    %v392 = vadd.f32 %v311, %v391
    %v393 = vpop.f32.mrf.mxu0
    %394 = vdwg.mxu0
    %v395 = vld [vmem:[%s3] sm:$0x1]
    %v397 = vlaneseq
    %v398 = vshrl.u32 %v397, 7
    %v399 = vsub.s32 0, %v398
    %v400 = vrot.slane %v395, %v399
    %v402 = vadd.f32 %v387, %v400
    %v403 = vadd.f32 %v392, %v400
    %vm404 = vcmask 195584
    %405 = vst.msk [vmem:[#allocation2] sm:$0xff] %vm404, %v402
    %406 = vst.msk [vmem:[#allocation2 + $0x8] sm:$0xff] %vm404, %v403
    // Predicated region
    $region18: #{net_forward.1} parent=1 // pred_check
      _
    $region19: #{net_forward.1} parent=1 // pred_check_branch
      %408 = sbr.rel (0) target = $region21
    $region20: #{net_forward.1} parent=1 // pred_region
      %s410 = ssub.s32 256, 256
      %411 = vsyncadd [#allocation3], %s410
      %s412 = sshll.u32 [#allocation2], 4
      %s413 = int_to_ptr.vmem [resolvable:$true] %s412
      %418 = dma.vmem_to_hbm [thread:$0]  %s413, 256, %s4, [#allocation3], 128, 128, 8
    $region21: #{net_forward.1} parent=1 // pred_fallthru
      _
    // Predicated region
    $region22: #{net_forward.1} parent=1 // pred_check
      _
    $region23: #{net_forward.1} parent=1 // pred_check_branch
      %420 = sbr.rel (0) target = $region25
    $region24: #{net_forward.1} parent=1 // pred_region
      %421 = dma.done [#allocation3], 256
    $region25: #{net_forward.1} parent=1 // pred_fallthru
      _
    %422 = vsyncpa [#allocation3], 1

</llo_original>
